<compile_context>
chip_gen: v5e
topology: v5e:2x2
jax: 0.10.0
libtpu: 0.0.40
codegen_flags: <defaults>
</compile_context>

<pallas_src>
import functools

import jax
import jax.numpy as jnp
from jax.experimental import pallas as pl
from jax.experimental.pallas import tpu as pltpu


def _round_up(x, m):
    return (x + m - 1) // m * m


# ----------------------------- Pallas kernel -------------------------------

def _fused_bert_heads_kernel(
        emb_ref, w_enc_ref, b_enc_ref,          # per-token encoder inputs
        cls_ref, w_pool_ref, b_pool_ref,        # pooler inputs (CLS tokens)
        w_word_ref, b_word_ref,                 # fused word heads  [D, 128]
        w_sent_ref, b_sent_ref,                 # fused sent. heads [D, 128]
        word_out_ref, sent_out_ref,             # outputs (lane-dense, 128 wide)
        *, n_sigmoid):
    # ---- per-token path: encoder layer + fused word heads -----------------
    # (TM, D)bf16 @ (D, D)bf16 -> f32 accumulate, f32 tanh epilogue.
    h = jnp.tanh(
        jnp.dot(emb_ref[...], w_enc_ref[...],
                preferred_element_type=jnp.float32) + b_enc_ref[...])
    # fused word heads: (TM, D)bf16 @ (D, 128)bf16 -> f32 (+ bias).
    zw = jnp.dot(h.astype(jnp.bfloat16), w_word_ref[...],
                 preferred_element_type=jnp.float32) + b_word_ref[...]
    word_out_ref[...] = zw.astype(word_out_ref.dtype)

    # ---- per-sequence path: pooler + fused sentence heads (step 0 only) ---
    @pl.when(pl.program_id(0) == 0)
    def _():
        h_cls = jnp.tanh(
            jnp.dot(cls_ref[...], w_enc_ref[...],
                    preferred_element_type=jnp.float32) + b_enc_ref[...])
        pooled = jnp.tanh(
            jnp.dot(h_cls.astype(jnp.bfloat16), w_pool_ref[...],
                    preferred_element_type=jnp.float32) + b_pool_ref[...])
        zs = jnp.dot(pooled.astype(jnp.bfloat16), w_sent_ref[...],
                     preferred_element_type=jnp.float32) + b_sent_ref[...]
        col = jax.lax.broadcasted_iota(jnp.int32, zs.shape, 1)
        # sigmoid on sentence_sentiment|sentence_emoji columns, raw rating.
        zs = jnp.where(col < n_sigmoid, jax.nn.sigmoid(zs), zs)
        sent_out_ref[...] = zs.astype(sent_out_ref.dtype)


def fused_bert_heads(emb_flat, cls_emb, w_enc, b_enc, w_pool, b_pool,
                     w_word, b_word, w_sent, b_sent, *, n_sigmoid, tile_m=256):
    """Fused encoder layer + all six prediction heads.

    emb_flat : [N_pad, D] bf16 token embeddings (N_pad multiple of tile_m)
    cls_emb  : [Bp, D]    bf16 CLS-token embeddings (Bp multiple of 16)
    returns (word_out [N_pad, 128] f32, sent_out [Bp, 128] f32)
    """
    n, d = emb_flat.shape
    bp = cls_emb.shape[0]
    lanes = w_word.shape[1]
    assert n % tile_m == 0 and lanes == 128

    kernel = functools.partial(_fused_bert_heads_kernel, n_sigmoid=n_sigmoid)
    return pl.pallas_call(
        kernel,
        out_shape=(jax.ShapeDtypeStruct((n, lanes), jnp.float32),
                   jax.ShapeDtypeStruct((bp, lanes), jnp.float32)),
        grid=(n // tile_m,),
        in_specs=[
            pl.BlockSpec((tile_m, d), lambda i: (i, 0)),   # token-emb tile
            pl.BlockSpec((d, d), lambda i: (0, 0)),        # w_enc   (resident)
            pl.BlockSpec((1, d), lambda i: (0, 0)),        # b_enc   (resident)
            pl.BlockSpec((bp, d), lambda i: (0, 0)),       # CLS emb (resident)
            pl.BlockSpec((d, d), lambda i: (0, 0)),        # w_pool  (resident)
            pl.BlockSpec((1, d), lambda i: (0, 0)),        # b_pool  (resident)
            pl.BlockSpec((d, lanes), lambda i: (0, 0)),    # fused word W
            pl.BlockSpec((1, lanes), lambda i: (0, 0)),    # fused word b
            pl.BlockSpec((d, lanes), lambda i: (0, 0)),    # fused sentence W
            pl.BlockSpec((1, lanes), lambda i: (0, 0)),    # fused sentence b
        ],
        out_specs=(
            pl.BlockSpec((tile_m, lanes), lambda i: (i, 0)),
            pl.BlockSpec((bp, lanes), lambda i: (0, 0)),
        ),
        # sent_out is a single resident output block (constant index_map),
        # written only at step 0 -> the grid axis must be "arbitrary" for
        # correctness (a "parallel" split across v7x's two TCs would race on
        # that block).  Measured parallel-vs-arbitrary impact is ~0 otherwise.
        compiler_params=pltpu.CompilerParams(
            dimension_semantics=("arbitrary",)),
    )(emb_flat, w_enc, b_enc, cls_emb, w_pool, b_pool,
      w_word, b_word, w_sent, b_sent)


# --------------------------- PretrainBERT forward ---------------------------

def pretrain_bert_forward(token_ids, bert_params, head_params, *,
                          sentiment_class, emoji_class, circle_loss=False,
                          tile_m=256):
    b, s = token_ids.shape
    d = bert_params["emb"].shape[1]
    lanes = 128

    # Embedding gather stays in JAX (data-dependent gather; negligible here).
    emb = bert_params["emb"][token_ids]                      # [B, S, D] f32
    emb_flat = emb.reshape(b * s, d)

    # Pad N up to a multiple of tile_m (no divisibility assert on B*S) and
    # cast activations to bf16 for the MXU.
    n = b * s
    n_pad = _round_up(max(n, tile_m), tile_m)
    if n_pad > n:
        emb_flat = jnp.pad(emb_flat, ((0, n_pad - n), (0, 0)))
    emb_flat = emb_flat.astype(jnp.bfloat16)

    # CLS-token embeddings feed the pooler path; pad rows to a bf16 sublane
    # multiple (16).
    bp = _round_up(max(b, 16), 16)
    cls_emb = emb[:, 0, :]
    if bp > b:
        cls_emb = jnp.pad(cls_emb, ((0, bp - b), (0, 0)))
    cls_emb = cls_emb.astype(jnp.bfloat16)

    # Encoder / pooler weights: bf16 MXU inputs, f32 biases.
    w_enc = bert_params["w_enc"].astype(jnp.bfloat16)
    b_enc = bert_params["b_enc"][None, :].astype(jnp.float32)
    w_pool = bert_params["w_pool"].astype(jnp.bfloat16)
    b_pool = bert_params["b_pool"][None, :].astype(jnp.float32)

    # Fused word heads: word_sentiment | word_sentiment_word | word_emoji,
    # zero-padded to 128 output columns (lane-dense stores in the kernel).
    cw0, cw1, cw2 = 3, sentiment_class + 1, emoji_class + 1
    cw = cw0 + cw1 + cw2
    w_word = jnp.concatenate(
        [head_params["w_word_sentiment"],
         head_params["w_word_sentiment_word"],
         head_params["w_word_emoji"],
         jnp.zeros((d, lanes - cw), jnp.float32)], axis=1).astype(jnp.bfloat16)
    b_word = jnp.concatenate(
        [head_params["b_word_sentiment"],
         head_params["b_word_sentiment_word"],
         head_params["b_word_emoji"],
         jnp.zeros((lanes - cw,), jnp.float32)], axis=0)[None, :]

    # Fused sentence heads: sentence_sentiment | sentence_emoji | rating,
    # zero-padded to 128 output columns.
    cs0, cs1, cs2 = sentiment_class, emoji_class, 5
    cs = cs0 + cs1 + cs2
    w_sent = jnp.concatenate(
        [head_params["w_sentence_sentiment"],
         head_params["w_sentence_emoji"],
         head_params["w_rating"],
         jnp.zeros((d, lanes - cs), jnp.float32)], axis=1).astype(jnp.bfloat16)
    b_sent = jnp.concatenate(
        [head_params["b_sentence_sentiment"],
         head_params["b_sentence_emoji"],
         head_params["b_rating"],
         jnp.zeros((lanes - cs,), jnp.float32)], axis=0)[None, :]

    n_sigmoid = 0 if circle_loss else sentiment_class + emoji_class

    # NOTE(v7x): at D >= 768 and tile_m >= 1024 re-derive the VMEM budget
    # against the 32 MiB default scoped limit (raise vmem_limit_bytes if
    # needed); at these sizes everything is tiny.
    word_out, sent_out = fused_bert_heads(
        emb_flat, cls_emb, w_enc, b_enc, w_pool, b_pool,
        w_word, b_word, w_sent, b_sent, n_sigmoid=n_sigmoid, tile_m=tile_m)

    # Slice off padded rows / columns and split the fused outputs.
    word_out = word_out[:n]
    word_sentiment = word_out[:, :cw0].reshape(b, s, cw0)
    word_sentiment_word = word_out[:, cw0:cw0 + cw1].reshape(b, s, cw1)
    word_emoji = word_out[:, cw0 + cw1:cw].reshape(b, s, cw2)

    sent_out = sent_out[:b]
    sentence_sentiment = sent_out[:, :cs0]
    sentence_emoji = sent_out[:, cs0:cs0 + cs1]
    rating = sent_out[:, cs0 + cs1:cs]

    return (word_sentiment, word_sentiment_word, word_emoji,
            sentence_sentiment, sentence_emoji, rating)


# --------------------------- pure-JAX reference -----------------------------

def reference_forward(token_ids, bert_params, head_params, *,
                      sentiment_class, emoji_class, circle_loss=False):
    """Pure-JAX reference with the same bf16-input / f32-accumulate numerics."""
    emb16 = bert_params["emb"][token_ids].astype(jnp.bfloat16)      # [B,S,D]
    w_enc16 = bert_params["w_enc"].astype(jnp.bfloat16)
    h = jnp.tanh(
        jnp.einsum("bsd,de->bse", emb16, w_enc16,
                   preferred_element_type=jnp.float32) + bert_params["b_enc"])
    h16 = h.astype(jnp.bfloat16)
    pooled = jnp.tanh(
        jnp.dot(h16[:, 0, :], bert_params["w_pool"].astype(jnp.bfloat16),
                preferred_element_type=jnp.float32) + bert_params["b_pool"])
    p16 = pooled.astype(jnp.bfloat16)

    def head(x16, w, bvec):
        return jnp.einsum("...d,de->...e", x16, w.astype(jnp.bfloat16),
                          preferred_element_type=jnp.float32) + bvec

    word_sentiment = head(h16, head_params["w_word_sentiment"],
                          head_params["b_word_sentiment"])
    word_sentiment_word = head(h16, head_params["w_word_sentiment_word"],
                               head_params["b_word_sentiment_word"])
    word_emoji = head(h16, head_params["w_word_emoji"],
                      head_params["b_word_emoji"])
    sentence_sentiment = head(p16, head_params["w_sentence_sentiment"],
                              head_params["b_sentence_sentiment"])
    sentence_emoji = head(p16, head_params["w_sentence_emoji"],
                          head_params["b_sentence_emoji"])
    rating = head(p16, head_params["w_rating"], head_params["b_rating"])
    if not circle_loss:
        sentence_sentiment = jax.nn.sigmoid(sentence_sentiment)
        sentence_emoji = jax.nn.sigmoid(sentence_emoji)
    return (word_sentiment, word_sentiment_word, word_emoji,
            sentence_sentiment, sentence_emoji, rating)


# --------------------------------- main -------------------------------------

if __name__ == "__main__":
    # "opt" configuration (small, deterministic)
    batch, seq = 4, 128
    vocab = 1000
    bert_dim = 128
    sentiment_class = 3
    emoji_class = 8

    key = jax.random.PRNGKey(0)
    keys = jax.random.split(key, 20)

    def lin(kw, kb, din, dout):
        return (0.02 * jax.random.normal(kw, (din, dout), jnp.float32),
                0.02 * jax.random.normal(kb, (dout,), jnp.float32))

    bert_params = {
        "emb": 0.02 * jax.random.normal(keys[0], (vocab, bert_dim), jnp.float32),
        "w_enc": 0.02 * jax.random.normal(keys[1], (bert_dim, bert_dim), jnp.float32),
        "b_enc": jnp.zeros((bert_dim,), jnp.float32),
        "w_pool": 0.02 * jax.random.normal(keys[2], (bert_dim, bert_dim), jnp.float32),
        "b_pool": jnp.zeros((bert_dim,), jnp.float32),
    }

    head_params = {}
    (head_params["w_word_sentiment"], head_params["b_word_sentiment"]) = \
        lin(keys[3], keys[4], bert_dim, 3)
    (head_params["w_word_sentiment_word"], head_params["b_word_sentiment_word"]) = \
        lin(keys[5], keys[6], bert_dim, sentiment_class + 1)
    (head_params["w_word_emoji"], head_params["b_word_emoji"]) = \
        lin(keys[7], keys[8], bert_dim, emoji_class + 1)
    (head_params["w_sentence_sentiment"], head_params["b_sentence_sentiment"]) = \
        lin(keys[9], keys[10], bert_dim, sentiment_class)
    (head_params["w_sentence_emoji"], head_params["b_sentence_emoji"]) = \
        lin(keys[11], keys[12], bert_dim, emoji_class)
    (head_params["w_rating"], head_params["b_rating"]) = \
        lin(keys[13], keys[14], bert_dim, 5)

    token_ids = jax.random.randint(keys[15], (batch, seq), 0, vocab, jnp.int32)

    fwd = jax.jit(functools.partial(
        pretrain_bert_forward,
        sentiment_class=sentiment_class, emoji_class=emoji_class,
        circle_loss=False, tile_m=256))
    outs = fwd(token_ids, bert_params, head_params)
    outs = jax.block_until_ready(outs)

    refs = reference_forward(
        token_ids, bert_params, head_params,
        sentiment_class=sentiment_class, emoji_class=emoji_class,
        circle_loss=False)

    for got, want in zip(outs, refs):
        assert got.shape == want.shape, (got.shape, want.shape)
        assert jnp.allclose(got, want, atol=1e-4, rtol=1e-3), \
            float(jnp.max(jnp.abs(got - want)))

    print("KERNEL_OK")
</pallas_src>

<mosaic_0001>
module attributes {stable_mosaic.version = 11 : i64} {
  func.func @_fused_bert_heads_kernel(%arg0: i32, %arg1: memref<256x128xbf16, #tpu.memory_space<vmem>>, %arg2: memref<128x128xbf16, #tpu.memory_space<vmem>>, %arg3: memref<1x128xf32, #tpu.memory_space<vmem>>, %arg4: memref<16x128xbf16, #tpu.memory_space<vmem>>, %arg5: memref<128x128xbf16, #tpu.memory_space<vmem>>, %arg6: memref<1x128xf32, #tpu.memory_space<vmem>>, %arg7: memref<128x128xbf16, #tpu.memory_space<vmem>>, %arg8: memref<1x128xf32, #tpu.memory_space<vmem>>, %arg9: memref<128x128xbf16, #tpu.memory_space<vmem>>, %arg10: memref<1x128xf32, #tpu.memory_space<vmem>>, %arg11: memref<256x128xf32, #tpu.memory_space<vmem>>, %arg12: memref<16x128xf32, #tpu.memory_space<vmem>>) attributes {dimension_semantics = [#tpu.dimension_semantics<arbitrary>], iteration_bounds = array<i64: 2>, scalar_prefetch = 0 : i64, scratch_operands = 0 : i64, tpu.core_type = #tpu.core_type<tc>, window_params = [{transform_indices = @transform_0, window_bounds = array<i64: 256, 128>}, {pipeline_mode = #tpu.pipeline_mode<synchronous>, transform_indices = @transform_1, window_bounds = array<i64: 128, 128>}, {pipeline_mode = #tpu.pipeline_mode<synchronous>, transform_indices = @transform_2, window_bounds = array<i64: 1, 128>}, {pipeline_mode = #tpu.pipeline_mode<synchronous>, transform_indices = @transform_3, window_bounds = array<i64: 16, 128>}, {pipeline_mode = #tpu.pipeline_mode<synchronous>, transform_indices = @transform_4, window_bounds = array<i64: 128, 128>}, {pipeline_mode = #tpu.pipeline_mode<synchronous>, transform_indices = @transform_5, window_bounds = array<i64: 1, 128>}, {pipeline_mode = #tpu.pipeline_mode<synchronous>, transform_indices = @transform_6, window_bounds = array<i64: 128, 128>}, {pipeline_mode = #tpu.pipeline_mode<synchronous>, transform_indices = @transform_7, window_bounds = array<i64: 1, 128>}, {pipeline_mode = #tpu.pipeline_mode<synchronous>, transform_indices = @transform_8, window_bounds = array<i64: 128, 128>}, {pipeline_mode = #tpu.pipeline_mode<synchronous>, transform_indices = @transform_9, window_bounds = array<i64: 1, 128>}, {transform_indices = @transform_10, window_bounds = array<i64: 256, 128>}, {pipeline_mode = #tpu.pipeline_mode<synchronous>, transform_indices = @transform_11, window_bounds = array<i64: 16, 128>}]} {
    %c0 = arith.constant 0 : index
    %c0_0 = arith.constant 0 : index
    %0 = vector.load %arg1[%c0, %c0_0] : memref<256x128xbf16, #tpu.memory_space<vmem>>, vector<256x128xbf16>
    %c0_1 = arith.constant 0 : index
    %c0_2 = arith.constant 0 : index
    %1 = vector.load %arg2[%c0_1, %c0_2] : memref<128x128xbf16, #tpu.memory_space<vmem>>, vector<128x128xbf16>
    %cst = arith.constant dense<0.000000e+00> : vector<256x128xf32>
    %2 = tpu.matmul %0, %1, %cst {dimension_numbers = #tpu.dot_dimension_numbers<[1], [0], [0], [1], [0, 0, 1, 1], [], []>} : vector<256x128xbf16>, vector<128x128xbf16>, vector<256x128xf32> -> vector<256x128xf32>
    %c0_3 = arith.constant 0 : index
    %c0_4 = arith.constant 0 : index
    %3 = vector.load %arg3[%c0_3, %c0_4] : memref<1x128xf32, #tpu.memory_space<vmem>>, vector<1x128xf32>
    %4 = vector.broadcast %3 : vector<1x128xf32> to vector<256x128xf32>
    %5 = arith.addf %2, %4 : vector<256x128xf32>
    %6 = math.tanh %5 : vector<256x128xf32>
    %7 = arith.truncf %6 : vector<256x128xf32> to vector<256x128xbf16>
    %c0_5 = arith.constant 0 : index
    %c0_6 = arith.constant 0 : index
    %8 = vector.load %arg7[%c0_5, %c0_6] : memref<128x128xbf16, #tpu.memory_space<vmem>>, vector<128x128xbf16>
    %cst_7 = arith.constant dense<0.000000e+00> : vector<256x128xf32>
    %9 = tpu.matmul %7, %8, %cst_7 {dimension_numbers = #tpu.dot_dimension_numbers<[1], [0], [0], [1], [0, 0, 1, 1], [], []>} : vector<256x128xbf16>, vector<128x128xbf16>, vector<256x128xf32> -> vector<256x128xf32>
    %c0_8 = arith.constant 0 : index
    %c0_9 = arith.constant 0 : index
    %10 = vector.load %arg8[%c0_8, %c0_9] : memref<1x128xf32, #tpu.memory_space<vmem>>, vector<1x128xf32>
    %11 = vector.broadcast %10 : vector<1x128xf32> to vector<256x128xf32>
    %12 = arith.addf %9, %11 : vector<256x128xf32>
    %c0_10 = arith.constant 0 : index
    %c0_11 = arith.constant 0 : index
    %13 = vector.load %arg11[%c0_10, %c0_11] : memref<256x128xf32, #tpu.memory_space<vmem>>, vector<256x128xf32>
    tpu.vector_store %arg11[%c0_10, %c0_11], %12 {strides = array<i32>} : memref<256x128xf32, #tpu.memory_space<vmem>>, vector<256x128xf32>,
    %c0_i32 = arith.constant 0 : i32
    %14 = arith.cmpi eq, %arg0, %c0_i32 : i32
    %15 = arith.extui %14 : i1 to i32
    %c0_i32_12 = arith.constant 0 : i32
    %16 = arith.cmpi ne, %15, %c0_i32_12 : i32
    scf.if %16 {
      %c0_13 = arith.constant 0 : index
      %c0_14 = arith.constant 0 : index
      %17 = vector.load %arg4[%c0_13, %c0_14] : memref<16x128xbf16, #tpu.memory_space<vmem>>, vector<16x128xbf16>
      %c0_15 = arith.constant 0 : index
      %c0_16 = arith.constant 0 : index
      %18 = vector.load %arg2[%c0_15, %c0_16] : memref<128x128xbf16, #tpu.memory_space<vmem>>, vector<128x128xbf16>
      %cst_17 = arith.constant dense<0.000000e+00> : vector<16x128xf32>
      %19 = tpu.matmul %17, %18, %cst_17 {dimension_numbers = #tpu.dot_dimension_numbers<[1], [0], [0], [1], [0, 0, 1, 1], [], []>} : vector<16x128xbf16>, vector<128x128xbf16>, vector<16x128xf32> -> vector<16x128xf32>
      %c0_18 = arith.constant 0 : index
      %c0_19 = arith.constant 0 : index
      %20 = vector.load %arg3[%c0_18, %c0_19] : memref<1x128xf32, #tpu.memory_space<vmem>>, vector<1x128xf32>
      %21 = vector.broadcast %20 : vector<1x128xf32> to vector<16x128xf32>
      %22 = arith.addf %19, %21 : vector<16x128xf32>
      %23 = math.tanh %22 : vector<16x128xf32>
      %24 = arith.truncf %23 : vector<16x128xf32> to vector<16x128xbf16>
      %c0_20 = arith.constant 0 : index
      %c0_21 = arith.constant 0 : index
      %25 = vector.load %arg5[%c0_20, %c0_21] : memref<128x128xbf16, #tpu.memory_space<vmem>>, vector<128x128xbf16>
      %cst_22 = arith.constant dense<0.000000e+00> : vector<16x128xf32>
      %26 = tpu.matmul %24, %25, %cst_22 {dimension_numbers = #tpu.dot_dimension_numbers<[1], [0], [0], [1], [0, 0, 1, 1], [], []>} : vector<16x128xbf16>, vector<128x128xbf16>, vector<16x128xf32> -> vector<16x128xf32>
      %c0_23 = arith.constant 0 : index
      %c0_24 = arith.constant 0 : index
      %27 = vector.load %arg6[%c0_23, %c0_24] : memref<1x128xf32, #tpu.memory_space<vmem>>, vector<1x128xf32>
      %28 = vector.broadcast %27 : vector<1x128xf32> to vector<16x128xf32>
      %29 = arith.addf %26, %28 : vector<16x128xf32>
      %30 = math.tanh %29 : vector<16x128xf32>
      %31 = arith.truncf %30 : vector<16x128xf32> to vector<16x128xbf16>
      %c0_25 = arith.constant 0 : index
      %c0_26 = arith.constant 0 : index
      %32 = vector.load %arg9[%c0_25, %c0_26] : memref<128x128xbf16, #tpu.memory_space<vmem>>, vector<128x128xbf16>
      %cst_27 = arith.constant dense<0.000000e+00> : vector<16x128xf32>
      %33 = tpu.matmul %31, %32, %cst_27 {dimension_numbers = #tpu.dot_dimension_numbers<[1], [0], [0], [1], [0, 0, 1, 1], [], []>} : vector<16x128xbf16>, vector<128x128xbf16>, vector<16x128xf32> -> vector<16x128xf32>
      %c0_28 = arith.constant 0 : index
      %c0_29 = arith.constant 0 : index
      %34 = vector.load %arg10[%c0_28, %c0_29] : memref<1x128xf32, #tpu.memory_space<vmem>>, vector<1x128xf32>
      %35 = vector.broadcast %34 : vector<1x128xf32> to vector<16x128xf32>
      %36 = arith.addf %33, %35 : vector<16x128xf32>
      %37 = tpu.iota {dimensions = array<i32: 1>} : vector<16x128xi32>
      %c11_i32 = arith.constant 11 : i32
      %38 = vector.broadcast %c11_i32 : i32 to vector<16x128xi32>
      %39 = arith.cmpi slt, %37, %38 : vector<16x128xi32>
      %40 = arith.negf %36 : vector<16x128xf32>
      %41 = math.exp %40 : vector<16x128xf32>
      %cst_30 = arith.constant 1.000000e+00 : f32
      %42 = vector.broadcast %cst_30 : f32 to vector<16x128xf32>
      %43 = arith.addf %42, %41 : vector<16x128xf32>
      %44 = arith.divf %42, %43 : vector<16x128xf32>
      %45 = arith.select %39, %44, %36 : vector<16x128xi1>, vector<16x128xf32>
      %c0_31 = arith.constant 0 : index
      %c0_32 = arith.constant 0 : index
      %46 = vector.load %arg12[%c0_31, %c0_32] : memref<16x128xf32, #tpu.memory_space<vmem>>, vector<16x128xf32>
      tpu.vector_store %arg12[%c0_31, %c0_32], %45 {strides = array<i32>} : memref<16x128xf32, #tpu.memory_space<vmem>>, vector<16x128xf32>,
    } else {
    }
    return
  }
  func.func @transform_0(%arg0: i32) -> (i32, i32) {
    %c0_i32 = arith.constant 0 : i32
    %c0_i32_0 = arith.constant 0 : i32
    return %arg0, %c0_i32 : i32, i32
  }
  func.func @transform_1(%arg0: i32) -> (i32, i32) {
    %c0_i32 = arith.constant 0 : i32
    %c0_i32_0 = arith.constant 0 : i32
    %c0_i32_1 = arith.constant 0 : i32
    return %c0_i32, %c0_i32_0 : i32, i32
  }
  func.func @transform_2(%arg0: i32) -> (i32, i32) {
    %c0_i32 = arith.constant 0 : i32
    %c0_i32_0 = arith.constant 0 : i32
    %c0_i32_1 = arith.constant 0 : i32
    return %c0_i32, %c0_i32_0 : i32, i32
  }
  func.func @transform_3(%arg0: i32) -> (i32, i32) {
    %c0_i32 = arith.constant 0 : i32
    %c0_i32_0 = arith.constant 0 : i32
    %c0_i32_1 = arith.constant 0 : i32
    return %c0_i32, %c0_i32_0 : i32, i32
  }
  func.func @transform_4(%arg0: i32) -> (i32, i32) {
    %c0_i32 = arith.constant 0 : i32
    %c0_i32_0 = arith.constant 0 : i32
    %c0_i32_1 = arith.constant 0 : i32
    return %c0_i32, %c0_i32_0 : i32, i32
  }
  func.func @transform_5(%arg0: i32) -> (i32, i32) {
    %c0_i32 = arith.constant 0 : i32
    %c0_i32_0 = arith.constant 0 : i32
    %c0_i32_1 = arith.constant 0 : i32
    return %c0_i32, %c0_i32_0 : i32, i32
  }
  func.func @transform_6(%arg0: i32) -> (i32, i32) {
    %c0_i32 = arith.constant 0 : i32
    %c0_i32_0 = arith.constant 0 : i32
    %c0_i32_1 = arith.constant 0 : i32
    return %c0_i32, %c0_i32_0 : i32, i32
  }
  func.func @transform_7(%arg0: i32) -> (i32, i32) {
    %c0_i32 = arith.constant 0 : i32
    %c0_i32_0 = arith.constant 0 : i32
    %c0_i32_1 = arith.constant 0 : i32
    return %c0_i32, %c0_i32_0 : i32, i32
  }
  func.func @transform_8(%arg0: i32) -> (i32, i32) {
    %c0_i32 = arith.constant 0 : i32
    %c0_i32_0 = arith.constant 0 : i32
    %c0_i32_1 = arith.constant 0 : i32
    return %c0_i32, %c0_i32_0 : i32, i32
  }
  func.func @transform_9(%arg0: i32) -> (i32, i32) {
    %c0_i32 = arith.constant 0 : i32
    %c0_i32_0 = arith.constant 0 : i32
    %c0_i32_1 = arith.constant 0 : i32
    return %c0_i32, %c0_i32_0 : i32, i32
  }
  func.func @transform_10(%arg0: i32) -> (i32, i32) {
    %c0_i32 = arith.constant 0 : i32
    %c0_i32_0 = arith.constant 0 : i32
    return %arg0, %c0_i32 : i32, i32
  }
  func.func @transform_11(%arg0: i32) -> (i32, i32) {
    %c0_i32 = arith.constant 0 : i32
    %c0_i32_0 = arith.constant 0 : i32
    %c0_i32_1 = arith.constant 0 : i32
    return %c0_i32, %c0_i32_0 : i32, i32
  }
}

</mosaic_0001>

<llo_original>
// kernel: pretrain_bert_forward.1
$region0: #{pretrain_bert_forward.1}
  #allocation0 [shape = 'u32[]', space=smem, size = 0x4, offset = 0x4, fixed_abs, tag = 'smem constant byte address 0x4 - core index']
  #allocation1 [shape = 'u32[72,128]{1,0:T(1,128)}', space=vmem, size = 0x9000, scoped, tag = 'internal scratch']
  %s0 = inlined_call_operand.vmem [shape: bf16[512,128], index: 0, kind: input, shape index: {}]
  %s1 = inlined_call_operand.vmem [shape: bf16[128,128], index: 1, kind: input, shape index: {}]
  %s2 = inlined_call_operand.vmem [shape: f32[1,128], index: 2, kind: input, shape index: {}]
  %s3 = inlined_call_operand.vmem [shape: bf16[16,128], index: 3, kind: input, shape index: {}]
  %s4 = inlined_call_operand.vmem [shape: bf16[128,128], index: 4, kind: input, shape index: {}]
  %s5 = inlined_call_operand.vmem [shape: f32[1,128], index: 5, kind: input, shape index: {}]
  %s6 = inlined_call_operand.vmem [shape: bf16[128,128], index: 6, kind: input, shape index: {}]
  %s7 = inlined_call_operand.vmem [shape: f32[1,128], index: 7, kind: input, shape index: {}]
  %s8 = inlined_call_operand.vmem [shape: bf16[128,128], index: 8, kind: input, shape index: {}]
  %s9 = inlined_call_operand.vmem [shape: f32[1,128], index: 9, kind: input, shape index: {}]
  %s10 = inlined_call_operand.vmem [shape: f32[512,128], index: 10, kind: output, shape index: {0}]
  %s11 = inlined_call_operand.vmem [shape: f32[16,128], index: 11, kind: output, shape index: {1}]
  %12 = xla_tuple %s10, %s11
  %s13 = sld [smem:[#allocation0]]
  $region85: #{pretrain_bert_forward.1} parent=0
    _
  %s15 = ssub.s32 1, %s13
  %s16 = scalar_select 0, %s15, %s13
  loop: start=0, step=1, limit=4
  $region2: #{pretrain_bert_forward.1} parent=0 // loop_pre_header
    _
  $region3: #{pretrain_bert_forward.1} parent=0 // loop_header
    %s18 = sphi 0, %s22
    %p19 = scmp.ge.s32.totalorder %s18, 4
    %s28 = sphi 0, %s30
    %s31 = sphi 0, %s28
    %s32 = sphi 0, %s31
    %s48 = sphi 0, %s32
    %s52 = sphi 0, %s52
    %s54 = sphi 0, %s52
    %s55 = sphi 0, %s54
    %s69 = sphi 0, %s55
    %s73 = sphi 0, %s73
    %s75 = sphi 0, %s73
    %s76 = sphi 0, %s75
    %s90 = sphi 0, %s76
    %s94 = sphi 0, %s94
    %s96 = sphi 0, %s94
    %s97 = sphi 0, %s96
    %s111 = sphi 0, %s97
    %s115 = sphi 0, %s115
    %s117 = sphi 0, %s115
    %s118 = sphi 0, %s117
    %s132 = sphi 0, %s118
    %s136 = sphi 0, %s136
    %s138 = sphi 0, %s136
    %s139 = sphi 0, %s138
    %s153 = sphi 0, %s139
    %s157 = sphi 0, %s157
    %s159 = sphi 0, %s157
    %s160 = sphi 0, %s159
    %s174 = sphi 0, %s160
    %s178 = sphi 0, %s178
    %s180 = sphi 0, %s178
    %s181 = sphi 0, %s180
    %s195 = sphi 0, %s181
    %s199 = sphi 0, %s199
    %s201 = sphi 0, %s199
    %s202 = sphi 0, %s201
    %s216 = sphi 0, %s202
    %s220 = sphi 0, %s220
    %s222 = sphi 0, %s220
    %s223 = sphi 0, %s222
    %s237 = sphi 0, %s223
    %s243 = sphi 0, %s245
    %s246 = sphi 0, %s243
    %s247 = sphi 0, %s246
    %s263 = sphi 0, %s247
    %s267 = sphi 0, %s267
    %s269 = sphi 0, %s267
    %s270 = sphi 0, %s269
    %s284 = sphi 0, %s270
  $region4: #{pretrain_bert_forward.1} parent=0 // loop_header_branch
    %21 = sbr.rel (%p19) target = $region8
  $region5: #{pretrain_bert_forward.1} parent=0 // loop_body
    %s23 = ssub.s32 %s18, 1
    %s24 = ssub.s32 %s18, 2
    %s25 = sadd.s32 %s18, 1
    %s26 = ssub.s32 %s18, %s25
    %p27 = scmp.eq.s32.totalorder %s26, 0
    %s29 = sadd.s32 %s28, 1
    %s30 = scalar_select %p27, %s28, %s29
    %p33 = pneg %p27
    %p34 = scmp.eq.s32.totalorder %s18, 1
    %p35 = por %p33, %p34
    %p36 = scmp.ne.s32.totalorder %s28, %s31
    %p37 = scmp.eq.s32.totalorder %s18, 0
    %p38 = por %p36, %p37
    %p39 = scmp.ne.s32.totalorder %s28, %s31
    %p40 = scmp.eq.s32.totalorder %s23, 1
    %p41 = por %p39, %p40
    %p42 = scmp.ne.s32.totalorder %s31, %s32
    %p43 = scmp.eq.s32.totalorder %s23, 0
    %p44 = por %p42, %p43
    %p45 = scmp.ne.s32.totalorder %s31, %s32
    %p46 = scmp.eq.s32.totalorder %s24, 1
    %p47 = por %p45, %p46
    %p49 = scmp.ne.s32.totalorder %s32, %s48
    %p50 = scmp.eq.s32.totalorder %s24, 0
    %p51 = por %p49, %p50
    %s53 = sadd.s32 %s52, 1
    %p56 = scmp.eq.s32.totalorder %s18, 1
    %p57 = scmp.ne.s32.totalorder %s52, %s54
    %p58 = scmp.eq.s32.totalorder %s18, 0
    %p59 = por %p57, %p58
    %p60 = scmp.ne.s32.totalorder %s52, %s54
    %p61 = scmp.eq.s32.totalorder %s23, 1
    %p62 = por %p60, %p61
    %p63 = scmp.ne.s32.totalorder %s54, %s55
    %p64 = scmp.eq.s32.totalorder %s23, 0
    %p65 = por %p63, %p64
    %p66 = scmp.ne.s32.totalorder %s54, %s55
    %p67 = scmp.eq.s32.totalorder %s24, 1
    %p68 = por %p66, %p67
    %p70 = scmp.ne.s32.totalorder %s55, %s69
    %p71 = scmp.eq.s32.totalorder %s24, 0
    %p72 = por %p70, %p71
    %s74 = sadd.s32 %s73, 1
    %p77 = scmp.eq.s32.totalorder %s18, 1
    %p78 = scmp.ne.s32.totalorder %s73, %s75
    %p79 = scmp.eq.s32.totalorder %s18, 0
    %p80 = por %p78, %p79
    %p81 = scmp.ne.s32.totalorder %s73, %s75
    %p82 = scmp.eq.s32.totalorder %s23, 1
    %p83 = por %p81, %p82
    %p84 = scmp.ne.s32.totalorder %s75, %s76
    %p85 = scmp.eq.s32.totalorder %s23, 0
    %p86 = por %p84, %p85
    %p87 = scmp.ne.s32.totalorder %s75, %s76
    %p88 = scmp.eq.s32.totalorder %s24, 1
    %p89 = por %p87, %p88
    %p91 = scmp.ne.s32.totalorder %s76, %s90
    %p92 = scmp.eq.s32.totalorder %s24, 0
    %p93 = por %p91, %p92
    %s95 = sadd.s32 %s94, 1
    %p98 = scmp.eq.s32.totalorder %s18, 1
    %p99 = scmp.ne.s32.totalorder %s94, %s96
    %p100 = scmp.eq.s32.totalorder %s18, 0
    %p101 = por %p99, %p100
    %p102 = scmp.ne.s32.totalorder %s94, %s96
    %p103 = scmp.eq.s32.totalorder %s23, 1
    %p104 = por %p102, %p103
    %p105 = scmp.ne.s32.totalorder %s96, %s97
    %p106 = scmp.eq.s32.totalorder %s23, 0
    %p107 = por %p105, %p106
    %p108 = scmp.ne.s32.totalorder %s96, %s97
    %p109 = scmp.eq.s32.totalorder %s24, 1
    %p110 = por %p108, %p109
    %p112 = scmp.ne.s32.totalorder %s97, %s111
    %p113 = scmp.eq.s32.totalorder %s24, 0
    %p114 = por %p112, %p113
    %s116 = sadd.s32 %s115, 1
    %p119 = scmp.eq.s32.totalorder %s18, 1
    %p120 = scmp.ne.s32.totalorder %s115, %s117
    %p121 = scmp.eq.s32.totalorder %s18, 0
    %p122 = por %p120, %p121
    %p123 = scmp.ne.s32.totalorder %s115, %s117
    %p124 = scmp.eq.s32.totalorder %s23, 1
    %p125 = por %p123, %p124
    %p126 = scmp.ne.s32.totalorder %s117, %s118
    %p127 = scmp.eq.s32.totalorder %s23, 0
    %p128 = por %p126, %p127
    %p129 = scmp.ne.s32.totalorder %s117, %s118
    %p130 = scmp.eq.s32.totalorder %s24, 1
    %p131 = por %p129, %p130
    %p133 = scmp.ne.s32.totalorder %s118, %s132
    %p134 = scmp.eq.s32.totalorder %s24, 0
    %p135 = por %p133, %p134
    %s137 = sadd.s32 %s136, 1
    %p140 = scmp.eq.s32.totalorder %s18, 1
    %p141 = scmp.ne.s32.totalorder %s136, %s138
    %p142 = scmp.eq.s32.totalorder %s18, 0
    %p143 = por %p141, %p142
    %p144 = scmp.ne.s32.totalorder %s136, %s138
    %p145 = scmp.eq.s32.totalorder %s23, 1
    %p146 = por %p144, %p145
    %p147 = scmp.ne.s32.totalorder %s138, %s139
    %p148 = scmp.eq.s32.totalorder %s23, 0
    %p149 = por %p147, %p148
    %p150 = scmp.ne.s32.totalorder %s138, %s139
    %p151 = scmp.eq.s32.totalorder %s24, 1
    %p152 = por %p150, %p151
    %p154 = scmp.ne.s32.totalorder %s139, %s153
    %p155 = scmp.eq.s32.totalorder %s24, 0
    %p156 = por %p154, %p155
    %s158 = sadd.s32 %s157, 1
    %p161 = scmp.eq.s32.totalorder %s18, 1
    %p162 = scmp.ne.s32.totalorder %s157, %s159
    %p163 = scmp.eq.s32.totalorder %s18, 0
    %p164 = por %p162, %p163
    %p165 = scmp.ne.s32.totalorder %s157, %s159
    %p166 = scmp.eq.s32.totalorder %s23, 1
    %p167 = por %p165, %p166
    %p168 = scmp.ne.s32.totalorder %s159, %s160
    %p169 = scmp.eq.s32.totalorder %s23, 0
    %p170 = por %p168, %p169
    %p171 = scmp.ne.s32.totalorder %s159, %s160
    %p172 = scmp.eq.s32.totalorder %s24, 1
    %p173 = por %p171, %p172
    %p175 = scmp.ne.s32.totalorder %s160, %s174
    %p176 = scmp.eq.s32.totalorder %s24, 0
    %p177 = por %p175, %p176
    %s179 = sadd.s32 %s178, 1
    %p182 = scmp.eq.s32.totalorder %s18, 1
    %p183 = scmp.ne.s32.totalorder %s178, %s180
    %p184 = scmp.eq.s32.totalorder %s18, 0
    %p185 = por %p183, %p184
    %p186 = scmp.ne.s32.totalorder %s178, %s180
    %p187 = scmp.eq.s32.totalorder %s23, 1
    %p188 = por %p186, %p187
    %p189 = scmp.ne.s32.totalorder %s180, %s181
    %p190 = scmp.eq.s32.totalorder %s23, 0
    %p191 = por %p189, %p190
    %p192 = scmp.ne.s32.totalorder %s180, %s181
    %p193 = scmp.eq.s32.totalorder %s24, 1
    %p194 = por %p192, %p193
    %p196 = scmp.ne.s32.totalorder %s181, %s195
    %p197 = scmp.eq.s32.totalorder %s24, 0
    %p198 = por %p196, %p197
    %s200 = sadd.s32 %s199, 1
    %p203 = scmp.eq.s32.totalorder %s18, 1
    %p204 = scmp.ne.s32.totalorder %s199, %s201
    %p205 = scmp.eq.s32.totalorder %s18, 0
    %p206 = por %p204, %p205
    %p207 = scmp.ne.s32.totalorder %s199, %s201
    %p208 = scmp.eq.s32.totalorder %s23, 1
    %p209 = por %p207, %p208
    %p210 = scmp.ne.s32.totalorder %s201, %s202
    %p211 = scmp.eq.s32.totalorder %s23, 0
    %p212 = por %p210, %p211
    %p213 = scmp.ne.s32.totalorder %s201, %s202
    %p214 = scmp.eq.s32.totalorder %s24, 1
    %p215 = por %p213, %p214
    %p217 = scmp.ne.s32.totalorder %s202, %s216
    %p218 = scmp.eq.s32.totalorder %s24, 0
    %p219 = por %p217, %p218
    %s221 = sadd.s32 %s220, 1
    %p224 = scmp.eq.s32.totalorder %s18, 1
    %p225 = scmp.ne.s32.totalorder %s220, %s222
    %p226 = scmp.eq.s32.totalorder %s18, 0
    %p227 = por %p225, %p226
    %p228 = scmp.ne.s32.totalorder %s220, %s222
    %p229 = scmp.eq.s32.totalorder %s23, 1
    %p230 = por %p228, %p229
    %p231 = scmp.ne.s32.totalorder %s222, %s223
    %p232 = scmp.eq.s32.totalorder %s23, 0
    %p233 = por %p231, %p232
    %p234 = scmp.ne.s32.totalorder %s222, %s223
    %p235 = scmp.eq.s32.totalorder %s24, 1
    %p236 = por %p234, %p235
    %p238 = scmp.ne.s32.totalorder %s223, %s237
    %p239 = scmp.eq.s32.totalorder %s24, 0
    %p240 = por %p238, %p239
    %s241 = ssub.s32 %s18, %s25
    %p242 = scmp.eq.s32.totalorder %s241, 0
    %s244 = sadd.s32 %s243, 1
    %s245 = scalar_select %p242, %s243, %s244
    %p248 = pneg %p242
    %p249 = scmp.eq.s32.totalorder %s18, 1
    %p250 = por %p248, %p249
    %p251 = scmp.ne.s32.totalorder %s243, %s246
    %p252 = scmp.eq.s32.totalorder %s18, 0
    %p253 = por %p251, %p252
    %p254 = scmp.ne.s32.totalorder %s243, %s246
    %p255 = scmp.eq.s32.totalorder %s23, 1
    %p256 = por %p254, %p255
    %p257 = scmp.ne.s32.totalorder %s246, %s247
    %p258 = scmp.eq.s32.totalorder %s23, 0
    %p259 = por %p257, %p258
    %p260 = scmp.ne.s32.totalorder %s246, %s247
    %p261 = scmp.eq.s32.totalorder %s24, 1
    %p262 = por %p260, %p261
    %p264 = scmp.ne.s32.totalorder %s247, %s263
    %p265 = scmp.eq.s32.totalorder %s24, 0
    %p266 = por %p264, %p265
    %s268 = sadd.s32 %s267, 1
    %p271 = scmp.eq.s32.totalorder %s18, 1
    %p272 = scmp.ne.s32.totalorder %s267, %s269
    %p273 = scmp.eq.s32.totalorder %s18, 0
    %p274 = por %p272, %p273
    %p275 = scmp.ne.s32.totalorder %s267, %s269
    %p276 = scmp.eq.s32.totalorder %s23, 1
    %p277 = por %p275, %p276
    %p278 = scmp.ne.s32.totalorder %s269, %s270
    %p279 = scmp.eq.s32.totalorder %s23, 0
    %p280 = por %p278, %p279
    %p281 = scmp.ne.s32.totalorder %s269, %s270
    %p282 = scmp.eq.s32.totalorder %s24, 1
    %p283 = por %p281, %p282
    %p285 = scmp.ne.s32.totalorder %s270, %s284
    %p286 = scmp.eq.s32.totalorder %s24, 0
    %p287 = por %p285, %p286
    %p288 = scmp.le.s32.totalorder 1, %s18
    %p289 = scmp.lt.s32.totalorder %s18, 3
    %p290 = pnand %p288, %p289
    %p291 = pneg %p290
    // Predicated region
    $region9: #{pretrain_bert_forward.1} parent=5 // pred_check
      _
    $region10: #{pretrain_bert_forward.1} parent=5 // pred_check_branch
      %293 = sbr.rel (%p290) target = $region12
    $region11: #{pretrain_bert_forward.1} parent=5 // pred_region
      %s294 = ssub.s32 %s18, 1
      // Predicated region
      $region13: #{pretrain_bert_forward.1} parent=11 // pred_check
        %p295 = pneg %p65
      $region14: #{pretrain_bert_forward.1} parent=11 // pred_check_branch
        %297 = sbr.rel (%p295) target = $region16
      $region15: #{pretrain_bert_forward.1} parent=11 // pred_region
        _
      $region16: #{pretrain_bert_forward.1} parent=11 // pred_fallthru
        _
      // Predicated region
      $region17: #{pretrain_bert_forward.1} parent=11 // pred_check
        %p298 = pneg %p86
      $region18: #{pretrain_bert_forward.1} parent=11 // pred_check_branch
        %300 = sbr.rel (%p298) target = $region20
      $region19: #{pretrain_bert_forward.1} parent=11 // pred_region
        _
      $region20: #{pretrain_bert_forward.1} parent=11 // pred_fallthru
        _
      // Predicated region
      $region21: #{pretrain_bert_forward.1} parent=11 // pred_check
        %p301 = pneg %p107
      $region22: #{pretrain_bert_forward.1} parent=11 // pred_check_branch
        %303 = sbr.rel (%p301) target = $region24
      $region23: #{pretrain_bert_forward.1} parent=11 // pred_region
        _
      $region24: #{pretrain_bert_forward.1} parent=11 // pred_fallthru
        _
      // Predicated region
      $region25: #{pretrain_bert_forward.1} parent=11 // pred_check
        %p304 = pneg %p128
      $region26: #{pretrain_bert_forward.1} parent=11 // pred_check_branch
        %306 = sbr.rel (%p304) target = $region28
      $region27: #{pretrain_bert_forward.1} parent=11 // pred_region
        _
      $region28: #{pretrain_bert_forward.1} parent=11 // pred_fallthru
        _
      // Predicated region
      $region29: #{pretrain_bert_forward.1} parent=11 // pred_check
        %p307 = pneg %p149
      $region30: #{pretrain_bert_forward.1} parent=11 // pred_check_branch
        %309 = sbr.rel (%p307) target = $region32
      $region31: #{pretrain_bert_forward.1} parent=11 // pred_region
        _
      $region32: #{pretrain_bert_forward.1} parent=11 // pred_fallthru
        _
      // Predicated region
      $region33: #{pretrain_bert_forward.1} parent=11 // pred_check
        %p310 = pneg %p170
      $region34: #{pretrain_bert_forward.1} parent=11 // pred_check_branch
        %312 = sbr.rel (%p310) target = $region36
      $region35: #{pretrain_bert_forward.1} parent=11 // pred_region
        _
      $region36: #{pretrain_bert_forward.1} parent=11 // pred_fallthru
        _
      // Predicated region
      $region37: #{pretrain_bert_forward.1} parent=11 // pred_check
        %p313 = pneg %p191
      $region38: #{pretrain_bert_forward.1} parent=11 // pred_check_branch
        %315 = sbr.rel (%p313) target = $region40
      $region39: #{pretrain_bert_forward.1} parent=11 // pred_region
        _
      $region40: #{pretrain_bert_forward.1} parent=11 // pred_fallthru
        _
      // Predicated region
      $region41: #{pretrain_bert_forward.1} parent=11 // pred_check
        %p316 = pneg %p212
      $region42: #{pretrain_bert_forward.1} parent=11 // pred_check_branch
        %318 = sbr.rel (%p316) target = $region44
      $region43: #{pretrain_bert_forward.1} parent=11 // pred_region
        _
      $region44: #{pretrain_bert_forward.1} parent=11 // pred_fallthru
        _
      // Predicated region
      $region45: #{pretrain_bert_forward.1} parent=11 // pred_check
        %p319 = pneg %p233
      $region46: #{pretrain_bert_forward.1} parent=11 // pred_check_branch
        %321 = sbr.rel (%p319) target = $region48
      $region47: #{pretrain_bert_forward.1} parent=11 // pred_region
        _
      $region48: #{pretrain_bert_forward.1} parent=11 // pred_fallthru
        _
    $region12: #{pretrain_bert_forward.1} parent=5 // pred_fallthru
      _
    %p322 = scmp.lt.s32.totalorder %s18, 2
    // Predicated region
    $region49: #{pretrain_bert_forward.1} parent=5 // pred_check
      %p323 = pneg %p322
    $region50: #{pretrain_bert_forward.1} parent=5 // pred_check_branch
      %325 = sbr.rel (%p323) target = $region52
    $region51: #{pretrain_bert_forward.1} parent=5 // pred_region
      // Predicated region
      $region53: #{pretrain_bert_forward.1} parent=51 // pred_check
        %p326 = pneg %p38
      $region54: #{pretrain_bert_forward.1} parent=51 // pred_check_branch
        %328 = sbr.rel (%p326) target = $region56
      $region55: #{pretrain_bert_forward.1} parent=51 // pred_region
        %s329 = smul.u32 32, %s18
        %p330 = scmp.lt.s32.totalorder %s329, 63
        %s331 = scalar_select %p330, %s329, 63
        %s332 = smul.addr %s331, 4
        %s333 = scalar_lea.vmem %s0, %s332
        %s334 = smul.u32 32, %s18
      $region56: #{pretrain_bert_forward.1} parent=51 // pred_fallthru
        _
    $region52: #{pretrain_bert_forward.1} parent=5 // pred_fallthru
      _
    %p335 = scmp.le.s32.totalorder 1, %s18
    %p336 = scmp.lt.s32.totalorder %s18, 3
    %p337 = pnand %p335, %p336
    %p338 = pneg %p337
    // Predicated region
    $region57: #{pretrain_bert_forward.1} parent=5 // pred_check
      _
    $region58: #{pretrain_bert_forward.1} parent=5 // pred_check_branch
      %340 = sbr.rel (%p337) target = $region60
    $region59: #{pretrain_bert_forward.1} parent=5 // pred_region
      %s341 = ssub.s32 %s18, 1
      %s342 = smul.u32 32, %s23
      %p343 = scmp.lt.s32.totalorder %s342, 63
      %s344 = scalar_select %p343, %s342, 63
      %s345 = smul.addr %s344, 4
      %s346 = scalar_lea.vmem %s0, %s345
      %p347 = pneg %p44
      %p348 = pneg %p41
      %p349 = pneg %p65
      %p350 = pneg %p62
      %p351 = pneg %p86
      %p352 = pneg %p83
      %p353 = pneg %p107
      %p354 = pneg %p104
      %p355 = pneg %p128
      %p356 = pneg %p125
      %p357 = pneg %p149
      %p358 = pneg %p146
      %p359 = pneg %p170
      %p360 = pneg %p167
      %p361 = pneg %p191
      %p362 = pneg %p188
      %p363 = pneg %p212
      %p364 = pneg %p209
      %p365 = pneg %p233
      %p366 = pneg %p230
      %p367 = pneg %p259
      %p368 = pneg %p256
      %s369 = smul.u32 32, %s23
      %p370 = scmp.lt.s32.totalorder %s369, 63
      %s371 = scalar_select %p370, %s369, 63
      %s372 = smul.addr %s371, 8
      %s373 = scalar_lea.vmem %s10, %s372
      %p374 = pneg %p280
      %p375 = pneg %p277
      %s376 = smul.u32 32, %s23
      %p377 = scmp.lt.s32.totalorder %s376, 63
      %s378 = scalar_select %p377, %s376, 63
      %s379 = smul.addr %s378, 4
      %s380 = scalar_lea.vmem %s0, %s379
      %s381 = smul.u32 32, %s23
      %s382 = smul.u32 32, %s23
      %p383 = scmp.lt.s32.totalorder %s382, 63
      %s384 = scalar_select %p383, %s382, 63
      %s385 = smul.addr %s384, 8
      %s386 = scalar_lea.vmem %s10, %s385
      %s387 = smul.u32 32, %s23
      %v388 = vld [vmem:[%s380] sm:$0xf]
      %v389 = vld [vmem:[%s380 + $0x4] sm:$0xf]
      %v390 = vld [vmem:[%s380 + $0x8] sm:$0xf]
      %v391 = vld [vmem:[%s380 + $0xc] sm:$0xf]
      %v392 = vld [vmem:[%s380 + $0x10] sm:$0xf]
      %v393 = vld [vmem:[%s380 + $0x14] sm:$0xf]
      %v394 = vld [vmem:[%s380 + $0x18] sm:$0xf]
      %v395 = vld [vmem:[%s380 + $0x1c] sm:$0xf]
      %v396 = vld [vmem:[%s380 + $0x20] sm:$0xf]
      %v397 = vld [vmem:[%s380 + $0x24] sm:$0xf]
      %v398 = vld [vmem:[%s380 + $0x28] sm:$0xf]
      %v399 = vld [vmem:[%s380 + $0x2c] sm:$0xf]
      %v400 = vld [vmem:[%s380 + $0x30] sm:$0xf]
      %v401 = vld [vmem:[%s380 + $0x34] sm:$0xf]
      %v402 = vld [vmem:[%s380 + $0x38] sm:$0xf]
      %v403 = vld [vmem:[%s380 + $0x3c] sm:$0xf]
      %v404 = vld [vmem:[%s380 + $0x40] sm:$0xf]
      %v405 = vld [vmem:[%s380 + $0x44] sm:$0xf]
      %v406 = vld [vmem:[%s380 + $0x48] sm:$0xf]
      %v407 = vld [vmem:[%s380 + $0x4c] sm:$0xf]
      %v408 = vld [vmem:[%s380 + $0x50] sm:$0xf]
      %v409 = vld [vmem:[%s380 + $0x54] sm:$0xf]
      %v410 = vld [vmem:[%s380 + $0x58] sm:$0xf]
      %v411 = vld [vmem:[%s380 + $0x5c] sm:$0xf]
      %v412 = vld [vmem:[%s380 + $0x60] sm:$0xf]
      %v413 = vld [vmem:[%s380 + $0x64] sm:$0xf]
      %v414 = vld [vmem:[%s380 + $0x68] sm:$0xf]
      %v415 = vld [vmem:[%s380 + $0x6c] sm:$0xf]
      %v416 = vld [vmem:[%s380 + $0x70] sm:$0xf]
      %v417 = vld [vmem:[%s380 + $0x74] sm:$0xf]
      %v418 = vld [vmem:[%s380 + $0x78] sm:$0xf]
      %v419 = vld [vmem:[%s380 + $0x7c] sm:$0xf]
      %v420 = vld [vmem:[%s1] sm:$0xf]
      %v421 = vld [vmem:[%s1 + $0x4] sm:$0xf]
      %v422 = vld [vmem:[%s1 + $0x8] sm:$0xf]
      %v423 = vld [vmem:[%s1 + $0xc] sm:$0xf]
      %v424 = vld [vmem:[%s1 + $0x10] sm:$0xf]
      %v425 = vld [vmem:[%s1 + $0x14] sm:$0xf]
      %v426 = vld [vmem:[%s1 + $0x18] sm:$0xf]
      %v427 = vld [vmem:[%s1 + $0x1c] sm:$0xf]
      %v428 = vld [vmem:[%s1 + $0x20] sm:$0xf]
      %v429 = vld [vmem:[%s1 + $0x24] sm:$0xf]
      %v430 = vld [vmem:[%s1 + $0x28] sm:$0xf]
      %v431 = vld [vmem:[%s1 + $0x2c] sm:$0xf]
      %v432 = vld [vmem:[%s1 + $0x30] sm:$0xf]
      %v433 = vld [vmem:[%s1 + $0x34] sm:$0xf]
      %v434 = vld [vmem:[%s1 + $0x38] sm:$0xf]
      %v435 = vld [vmem:[%s1 + $0x3c] sm:$0xf]
      %v436 = vld [vmem:[%s2] sm:$0x1]
      %v438 = vperm.slane %v436, 0
      %v472 = vunpack.c.l.b16 %v388
      %v473 = vunpack.c.l.b16 %v389
      %v474 = vunpack.c.l.b16 %v390
      %v475 = vunpack.c.l.b16 %v391
      %v476 = vunpack.c.l.b16 %v392
      %v477 = vunpack.c.l.b16 %v393
      %v478 = vunpack.c.l.b16 %v394
      %v479 = vunpack.c.l.b16 %v395
      %v480 = vunpack.c.l.b16 %v396
      %v481 = vunpack.c.l.b16 %v397
      %v482 = vunpack.c.l.b16 %v398
      %v483 = vunpack.c.l.b16 %v399
      %v484 = vunpack.c.l.b16 %v400
      %v485 = vunpack.c.l.b16 %v401
      %v486 = vunpack.c.l.b16 %v402
      %v487 = vunpack.c.l.b16 %v403
      %v488 = vunpack.c.l.b16 %v404
      %v489 = vunpack.c.l.b16 %v405
      %v490 = vunpack.c.l.b16 %v406
      %v491 = vunpack.c.l.b16 %v407
      %v492 = vunpack.c.l.b16 %v408
      %v493 = vunpack.c.l.b16 %v409
      %v494 = vunpack.c.l.b16 %v410
      %v495 = vunpack.c.l.b16 %v411
      %v496 = vunpack.c.l.b16 %v412
      %v497 = vunpack.c.l.b16 %v413
      %v498 = vunpack.c.l.b16 %v414
      %v499 = vunpack.c.l.b16 %v415
      %v500 = vunpack.c.l.b16 %v416
      %v501 = vunpack.c.l.b16 %v417
      %v502 = vunpack.c.l.b16 %v418
      %v503 = vunpack.c.l.b16 %v419
      %v504 = vpack.c.b16 %v473, %v472
      %v505 = vpack.c.b16 %v475, %v474
      %v506 = vpack.c.b16 %v477, %v476
      %v507 = vpack.c.b16 %v479, %v478
      %v508 = vpack.c.b16 %v481, %v480
      %v509 = vpack.c.b16 %v483, %v482
      %v510 = vpack.c.b16 %v485, %v484
      %v511 = vpack.c.b16 %v487, %v486
      %v512 = vpack.c.b16 %v489, %v488
      %v513 = vpack.c.b16 %v491, %v490
      %v514 = vpack.c.b16 %v493, %v492
      %v515 = vpack.c.b16 %v495, %v494
      %v516 = vpack.c.b16 %v497, %v496
      %v517 = vpack.c.b16 %v499, %v498
      %v518 = vpack.c.b16 %v501, %v500
      %v519 = vpack.c.b16 %v503, %v502
      %v552 = vunpack.c.l.b16 %v420
      %v553 = vunpack.c.l.b16 %v421
      %v554 = vunpack.c.l.b16 %v422
      %v555 = vunpack.c.l.b16 %v423
      %v556 = vunpack.c.l.b16 %v424
      %v557 = vunpack.c.l.b16 %v425
      %v558 = vunpack.c.l.b16 %v426
      %v559 = vunpack.c.l.b16 %v427
      %v560 = vunpack.c.l.b16 %v428
      %v561 = vunpack.c.l.b16 %v429
      %v562 = vunpack.c.l.b16 %v430
      %v563 = vunpack.c.l.b16 %v431
      %v564 = vunpack.c.l.b16 %v432
      %v565 = vunpack.c.l.b16 %v433
      %v566 = vunpack.c.l.b16 %v434
      %v567 = vunpack.c.l.b16 %v435
      %v568 = vpack.c.b16 %v553, %v552
      %v569 = vpack.c.b16 %v555, %v554
      %v570 = vpack.c.b16 %v557, %v556
      %v571 = vpack.c.b16 %v559, %v558
      %v572 = vpack.c.b16 %v561, %v560
      %v573 = vpack.c.b16 %v563, %v562
      %v574 = vpack.c.b16 %v565, %v564
      %v575 = vpack.c.b16 %v567, %v566
      %584 = vmatpush.bf16.msra.mxu0 %v575
      %585 = vmatpush.bf16.msra.mxu0 %v574
      %586 = vmatpush.bf16.msra.mxu0 %v573
      %587 = vmatpush.bf16.msra.mxu0 %v572
      %588 = vmatpush.bf16.msra.mxu0 %v571
      %589 = vmatpush.bf16.msra.mxu0 %v570
      %590 = vmatpush.bf16.msra.mxu0 %v569
      %591 = vmatpush.bf16.msra.mxu0 %v568
      %592 = vmatmul.bf16.gmra.mxu0 %v504
      %v593 = vpop.f32.mrf.mxu0
      %v594 = vadd.f32 %v438, %v593
      %v595 = vpop.f32.mrf.mxu0
      %v596 = vadd.f32 %v438, %v595
      %597 = vmatmul.bf16.gmra.mxu0 %v505
      %v598 = vpop.f32.mrf.mxu0
      %v599 = vadd.f32 %v438, %v598
      %v600 = vpop.f32.mrf.mxu0
      %v601 = vadd.f32 %v438, %v600
      %602 = vmatmul.bf16.gmra.mxu0 %v506
      %v603 = vpop.f32.mrf.mxu0
      %v604 = vadd.f32 %v438, %v603
      %v605 = vpop.f32.mrf.mxu0
      %v606 = vadd.f32 %v438, %v605
      %607 = vmatmul.bf16.gmra.mxu0 %v507
      %v608 = vpop.f32.mrf.mxu0
      %v609 = vadd.f32 %v438, %v608
      %v610 = vpop.f32.mrf.mxu0
      %v611 = vadd.f32 %v438, %v610
      %612 = vmatmul.bf16.gmra.mxu0 %v508
      %v613 = vpop.f32.mrf.mxu0
      %v614 = vadd.f32 %v438, %v613
      %v615 = vpop.f32.mrf.mxu0
      %v616 = vadd.f32 %v438, %v615
      %617 = vmatmul.bf16.gmra.mxu0 %v509
      %v618 = vpop.f32.mrf.mxu0
      %v619 = vadd.f32 %v438, %v618
      %v620 = vpop.f32.mrf.mxu0
      %v621 = vadd.f32 %v438, %v620
      %622 = vmatmul.bf16.gmra.mxu0 %v510
      %v623 = vpop.f32.mrf.mxu0
      %v624 = vadd.f32 %v438, %v623
      %v625 = vpop.f32.mrf.mxu0
      %v626 = vadd.f32 %v438, %v625
      %627 = vmatmul.bf16.gmra.mxu0 %v511
      %v628 = vpop.f32.mrf.mxu0
      %v629 = vadd.f32 %v438, %v628
      %v630 = vpop.f32.mrf.mxu0
      %v631 = vadd.f32 %v438, %v630
      %632 = vmatmul.bf16.gmra.mxu0 %v512
      %v633 = vpop.f32.mrf.mxu0
      %v634 = vadd.f32 %v438, %v633
      %v635 = vpop.f32.mrf.mxu0
      %v636 = vadd.f32 %v438, %v635
      %637 = vmatmul.bf16.gmra.mxu0 %v513
      %v638 = vpop.f32.mrf.mxu0
      %v639 = vadd.f32 %v438, %v638
      %v640 = vpop.f32.mrf.mxu0
      %v641 = vadd.f32 %v438, %v640
      %642 = vmatmul.bf16.gmra.mxu0 %v514
      %v643 = vpop.f32.mrf.mxu0
      %v644 = vadd.f32 %v438, %v643
      %v645 = vpop.f32.mrf.mxu0
      %v646 = vadd.f32 %v438, %v645
      %647 = vmatmul.bf16.gmra.mxu0 %v515
      %v648 = vpop.f32.mrf.mxu0
      %v649 = vadd.f32 %v438, %v648
      %v650 = vpop.f32.mrf.mxu0
      %v651 = vadd.f32 %v438, %v650
      %652 = vmatmul.bf16.gmra.mxu0 %v516
      %v653 = vpop.f32.mrf.mxu0
      %v654 = vadd.f32 %v438, %v653
      %v655 = vpop.f32.mrf.mxu0
      %v656 = vadd.f32 %v438, %v655
      %657 = vmatmul.bf16.gmra.mxu0 %v517
      %v658 = vpop.f32.mrf.mxu0
      %v659 = vadd.f32 %v438, %v658
      %v660 = vpop.f32.mrf.mxu0
      %v661 = vadd.f32 %v438, %v660
      %662 = vmatmul.bf16.gmra.mxu0 %v518
      %v663 = vpop.f32.mrf.mxu0
      %v664 = vadd.f32 %v438, %v663
      %v665 = vpop.f32.mrf.mxu0
      %v666 = vadd.f32 %v438, %v665
      %667 = vmatmul.bf16.gmra.mxu0 %v519
      %v668 = vpop.f32.mrf.mxu0
      %v669 = vadd.f32 %v438, %v668
      %v670 = vpop.f32.mrf.mxu0
      %v671 = vadd.f32 %v438, %v670
      %672 = vdwg.mxu0
      %v673 = vtanh.pop %v594
      %v674 = vtanh.pop %v596
      %v675 = vtanh.pop %v599
      %v676 = vtanh.pop %v601
      %v677 = vtanh.pop %v604
      %v678 = vtanh.pop %v606
      %v679 = vtanh.pop %v609
      %v680 = vtanh.pop %v611
      %v681 = vtanh.pop %v614
      %v682 = vtanh.pop %v616
      %v683 = vtanh.pop %v619
      %v684 = vtanh.pop %v621
      %v685 = vtanh.pop %v624
      %v686 = vtanh.pop %v626
      %v687 = vtanh.pop %v629
      %v688 = vtanh.pop %v631
      %v689 = vtanh.pop %v634
      %v690 = vtanh.pop %v636
      %v691 = vtanh.pop %v639
      %v692 = vtanh.pop %v641
      %v693 = vtanh.pop %v644
      %v694 = vtanh.pop %v646
      %v695 = vtanh.pop %v649
      %v696 = vtanh.pop %v651
      %v697 = vtanh.pop %v654
      %v698 = vtanh.pop %v656
      %v699 = vtanh.pop %v659
      %v700 = vtanh.pop %v661
      %v701 = vtanh.pop %v664
      %v702 = vtanh.pop %v666
      %v703 = vtanh.pop %v669
      %v704 = vtanh.pop %v671
      %v705 = vpack.c.bf16 %v674, %v673
      %v706 = vpack.c.bf16 %v676, %v675
      %v707 = vpack.c.bf16 %v678, %v677
      %v708 = vpack.c.bf16 %v680, %v679
      %v709 = vpack.c.bf16 %v682, %v681
      %v710 = vpack.c.bf16 %v684, %v683
      %v711 = vpack.c.bf16 %v686, %v685
      %v712 = vpack.c.bf16 %v688, %v687
      %v713 = vpack.c.bf16 %v690, %v689
      %v714 = vpack.c.bf16 %v692, %v691
      %v715 = vpack.c.bf16 %v694, %v693
      %v716 = vpack.c.bf16 %v696, %v695
      %v717 = vpack.c.bf16 %v698, %v697
      %v718 = vpack.c.bf16 %v700, %v699
      %v719 = vpack.c.bf16 %v702, %v701
      %v720 = vpack.c.bf16 %v704, %v703
      %v721 = vld [vmem:[%s6] sm:$0xf]
      %v722 = vld [vmem:[%s6 + $0x4] sm:$0xf]
      %v723 = vld [vmem:[%s6 + $0x8] sm:$0xf]
      %v724 = vld [vmem:[%s6 + $0xc] sm:$0xf]
      %v725 = vld [vmem:[%s6 + $0x10] sm:$0xf]
      %v726 = vld [vmem:[%s6 + $0x14] sm:$0xf]
      %v727 = vld [vmem:[%s6 + $0x18] sm:$0xf]
      %v728 = vld [vmem:[%s6 + $0x1c] sm:$0xf]
      %v729 = vld [vmem:[%s6 + $0x20] sm:$0xf]
      %v730 = vld [vmem:[%s6 + $0x24] sm:$0xf]
      %v731 = vld [vmem:[%s6 + $0x28] sm:$0xf]
      %v732 = vld [vmem:[%s6 + $0x2c] sm:$0xf]
      %v733 = vld [vmem:[%s6 + $0x30] sm:$0xf]
      %v734 = vld [vmem:[%s6 + $0x34] sm:$0xf]
      %v735 = vld [vmem:[%s6 + $0x38] sm:$0xf]
      %v736 = vld [vmem:[%s6 + $0x3c] sm:$0xf]
      %v737 = vld [vmem:[%s7] sm:$0x1]
      %v739 = vperm.slane %v737, 0
      %v757 = vunpack.c.l.b16 %v721
      %v758 = vunpack.c.l.b16 %v722
      %v759 = vunpack.c.l.b16 %v723
      %v760 = vunpack.c.l.b16 %v724
      %v761 = vunpack.c.l.b16 %v725
      %v762 = vunpack.c.l.b16 %v726
      %v763 = vunpack.c.l.b16 %v727
      %v764 = vunpack.c.l.b16 %v728
      %v765 = vunpack.c.l.b16 %v729
      %v766 = vunpack.c.l.b16 %v730
      %v767 = vunpack.c.l.b16 %v731
      %v768 = vunpack.c.l.b16 %v732
      %v769 = vunpack.c.l.b16 %v733
      %v770 = vunpack.c.l.b16 %v734
      %v771 = vunpack.c.l.b16 %v735
      %v772 = vunpack.c.l.b16 %v736
      %v773 = vpack.c.b16 %v758, %v757
      %v774 = vpack.c.b16 %v760, %v759
      %v775 = vpack.c.b16 %v762, %v761
      %v776 = vpack.c.b16 %v764, %v763
      %v777 = vpack.c.b16 %v766, %v765
      %v778 = vpack.c.b16 %v768, %v767
      %v779 = vpack.c.b16 %v770, %v769
      %v780 = vpack.c.b16 %v772, %v771
      %789 = vmatpush.bf16.msra.mxu0 %v780
      %790 = vmatpush.bf16.msra.mxu0 %v779
      %791 = vmatpush.bf16.msra.mxu0 %v778
      %792 = vmatpush.bf16.msra.mxu0 %v777
      %793 = vmatpush.bf16.msra.mxu0 %v776
      %794 = vmatpush.bf16.msra.mxu0 %v775
      %795 = vmatpush.bf16.msra.mxu0 %v774
      %796 = vmatpush.bf16.msra.mxu0 %v773
      %797 = vmatmul.bf16.gmra.mxu0 %v705
      %v798 = vpop.f32.mrf.mxu0
      %v799 = vadd.f32 %v739, %v798
      %v800 = vpop.f32.mrf.mxu0
      %v801 = vadd.f32 %v739, %v800
      %802 = vmatmul.bf16.gmra.mxu0 %v706
      %v803 = vpop.f32.mrf.mxu0
      %v804 = vadd.f32 %v739, %v803
      %v805 = vpop.f32.mrf.mxu0
      %v806 = vadd.f32 %v739, %v805
      %807 = vmatmul.bf16.gmra.mxu0 %v707
      %v808 = vpop.f32.mrf.mxu0
      %v809 = vadd.f32 %v739, %v808
      %v810 = vpop.f32.mrf.mxu0
      %v811 = vadd.f32 %v739, %v810
      %812 = vmatmul.bf16.gmra.mxu0 %v708
      %v813 = vpop.f32.mrf.mxu0
      %v814 = vadd.f32 %v739, %v813
      %v815 = vpop.f32.mrf.mxu0
      %v816 = vadd.f32 %v739, %v815
      %817 = vmatmul.bf16.gmra.mxu0 %v709
      %v818 = vpop.f32.mrf.mxu0
      %v819 = vadd.f32 %v739, %v818
      %v820 = vpop.f32.mrf.mxu0
      %v821 = vadd.f32 %v739, %v820
      %822 = vmatmul.bf16.gmra.mxu0 %v710
      %v823 = vpop.f32.mrf.mxu0
      %v824 = vadd.f32 %v739, %v823
      %v825 = vpop.f32.mrf.mxu0
      %v826 = vadd.f32 %v739, %v825
      %827 = vmatmul.bf16.gmra.mxu0 %v711
      %v828 = vpop.f32.mrf.mxu0
      %v829 = vadd.f32 %v739, %v828
      %v830 = vpop.f32.mrf.mxu0
      %v831 = vadd.f32 %v739, %v830
      %832 = vmatmul.bf16.gmra.mxu0 %v712
      %v833 = vpop.f32.mrf.mxu0
      %v834 = vadd.f32 %v739, %v833
      %v835 = vpop.f32.mrf.mxu0
      %v836 = vadd.f32 %v739, %v835
      %837 = vmatmul.bf16.gmra.mxu0 %v713
      %v838 = vpop.f32.mrf.mxu0
      %v839 = vadd.f32 %v739, %v838
      %v840 = vpop.f32.mrf.mxu0
      %v841 = vadd.f32 %v739, %v840
      %842 = vmatmul.bf16.gmra.mxu0 %v714
      %v843 = vpop.f32.mrf.mxu0
      %v844 = vadd.f32 %v739, %v843
      %v845 = vpop.f32.mrf.mxu0
      %v846 = vadd.f32 %v739, %v845
      %847 = vmatmul.bf16.gmra.mxu0 %v715
      %v848 = vpop.f32.mrf.mxu0
      %v849 = vadd.f32 %v739, %v848
      %v850 = vpop.f32.mrf.mxu0
      %v851 = vadd.f32 %v739, %v850
      %852 = vmatmul.bf16.gmra.mxu0 %v716
      %v853 = vpop.f32.mrf.mxu0
      %v854 = vadd.f32 %v739, %v853
      %v855 = vpop.f32.mrf.mxu0
      %v856 = vadd.f32 %v739, %v855
      %857 = vmatmul.bf16.gmra.mxu0 %v717
      %v858 = vpop.f32.mrf.mxu0
      %v859 = vadd.f32 %v739, %v858
      %v860 = vpop.f32.mrf.mxu0
      %v861 = vadd.f32 %v739, %v860
      %862 = vmatmul.bf16.gmra.mxu0 %v718
      %v863 = vpop.f32.mrf.mxu0
      %v864 = vadd.f32 %v739, %v863
      %v865 = vpop.f32.mrf.mxu0
      %v866 = vadd.f32 %v739, %v865
      %867 = vmatmul.bf16.gmra.mxu0 %v719
      %v868 = vpop.f32.mrf.mxu0
      %v869 = vadd.f32 %v739, %v868
      %v870 = vpop.f32.mrf.mxu0
      %v871 = vadd.f32 %v739, %v870
      %872 = vmatmul.bf16.gmra.mxu0 %v720
      %v873 = vpop.f32.mrf.mxu0
      %v874 = vadd.f32 %v739, %v873
      %v875 = vpop.f32.mrf.mxu0
      %v876 = vadd.f32 %v739, %v875
      %877 = vdwg.mxu0
      %878 = vst [vmem:[%s386] sm:$0xff] %v799
      %879 = vst [vmem:[%s386 + $0x8] sm:$0xff] %v801
      %880 = vst [vmem:[%s386 + $0x10] sm:$0xff] %v804
      %881 = vst [vmem:[%s386 + $0x18] sm:$0xff] %v806
      %882 = vst [vmem:[%s386 + $0x20] sm:$0xff] %v809
      %883 = vst [vmem:[%s386 + $0x28] sm:$0xff] %v811
      %884 = vst [vmem:[%s386 + $0x30] sm:$0xff] %v814
      %885 = vst [vmem:[%s386 + $0x38] sm:$0xff] %v816
      %886 = vst [vmem:[%s386 + $0x40] sm:$0xff] %v819
      %887 = vst [vmem:[%s386 + $0x48] sm:$0xff] %v821
      %888 = vst [vmem:[%s386 + $0x50] sm:$0xff] %v824
      %889 = vst [vmem:[%s386 + $0x58] sm:$0xff] %v826
      %890 = vst [vmem:[%s386 + $0x60] sm:$0xff] %v829
      %891 = vst [vmem:[%s386 + $0x68] sm:$0xff] %v831
      %892 = vst [vmem:[%s386 + $0x70] sm:$0xff] %v834
      %893 = vst [vmem:[%s386 + $0x78] sm:$0xff] %v836
      %894 = vst [vmem:[%s386 + $0x80] sm:$0xff] %v839
      %895 = vst [vmem:[%s386 + $0x88] sm:$0xff] %v841
      %896 = vst [vmem:[%s386 + $0x90] sm:$0xff] %v844
      %897 = vst [vmem:[%s386 + $0x98] sm:$0xff] %v846
      %898 = vst [vmem:[%s386 + $0xa0] sm:$0xff] %v849
      %899 = vst [vmem:[%s386 + $0xa8] sm:$0xff] %v851
      %900 = vst [vmem:[%s386 + $0xb0] sm:$0xff] %v854
      %901 = vst [vmem:[%s386 + $0xb8] sm:$0xff] %v856
      %902 = vst [vmem:[%s386 + $0xc0] sm:$0xff] %v859
      %903 = vst [vmem:[%s386 + $0xc8] sm:$0xff] %v861
      %904 = vst [vmem:[%s386 + $0xd0] sm:$0xff] %v864
      %905 = vst [vmem:[%s386 + $0xd8] sm:$0xff] %v866
      %906 = vst [vmem:[%s386 + $0xe0] sm:$0xff] %v869
      %907 = vst [vmem:[%s386 + $0xe8] sm:$0xff] %v871
      %908 = vst [vmem:[%s386 + $0xf0] sm:$0xff] %v874
      %909 = vst [vmem:[%s386 + $0xf8] sm:$0xff] %v876
      %p910 = scmp.eq.s32.totalorder %s23, 0
      // Predicated region
      $region61: #{pretrain_bert_forward.1} parent=59 // pred_check
        %p911 = pneg %p910
      $region62: #{pretrain_bert_forward.1} parent=59 // pred_check_branch
        %913 = sbr.rel (%p911) target = $region64
      $region63: #{pretrain_bert_forward.1} parent=59 // pred_region
        %v914 = vld [vmem:[%s3] sm:$0xf]
        %v915 = vld [vmem:[%s3 + $0x4] sm:$0xf]
        %v916 = vld [vmem:[%s1] sm:$0xf]
        %v917 = vld [vmem:[%s1 + $0x4] sm:$0xf]
        %v918 = vld [vmem:[%s1 + $0x8] sm:$0xf]
        %v919 = vld [vmem:[%s1 + $0xc] sm:$0xf]
        %v920 = vld [vmem:[%s1 + $0x10] sm:$0xf]
        %v921 = vld [vmem:[%s1 + $0x14] sm:$0xf]
        %v922 = vld [vmem:[%s1 + $0x18] sm:$0xf]
        %v923 = vld [vmem:[%s1 + $0x1c] sm:$0xf]
        %v924 = vld [vmem:[%s1 + $0x20] sm:$0xf]
        %v925 = vld [vmem:[%s1 + $0x24] sm:$0xf]
        %v926 = vld [vmem:[%s1 + $0x28] sm:$0xf]
        %v927 = vld [vmem:[%s1 + $0x2c] sm:$0xf]
        %v928 = vld [vmem:[%s1 + $0x30] sm:$0xf]
        %v929 = vld [vmem:[%s1 + $0x34] sm:$0xf]
        %v930 = vld [vmem:[%s1 + $0x38] sm:$0xf]
        %v931 = vld [vmem:[%s1 + $0x3c] sm:$0xf]
        %v932 = vld [vmem:[%s2] sm:$0x1]
        %v934 = vperm.slane %v932, 0
        %v938 = vunpack.c.l.b16 %v914
        %v939 = vunpack.c.l.b16 %v915
        %v940 = vpack.c.b16 %v939, %v938
        %v958 = vunpack.c.l.b16 %v916
        %v959 = vunpack.c.l.b16 %v917
        %v960 = vunpack.c.l.b16 %v918
        %v961 = vunpack.c.l.b16 %v919
        %v962 = vunpack.c.l.b16 %v920
        %v963 = vunpack.c.l.b16 %v921
        %v964 = vunpack.c.l.b16 %v922
        %v965 = vunpack.c.l.b16 %v923
        %v966 = vunpack.c.l.b16 %v924
        %v967 = vunpack.c.l.b16 %v925
        %v968 = vunpack.c.l.b16 %v926
        %v969 = vunpack.c.l.b16 %v927
        %v970 = vunpack.c.l.b16 %v928
        %v971 = vunpack.c.l.b16 %v929
        %v972 = vunpack.c.l.b16 %v930
        %v973 = vunpack.c.l.b16 %v931
        %v974 = vpack.c.b16 %v959, %v958
        %v975 = vpack.c.b16 %v961, %v960
        %v976 = vpack.c.b16 %v963, %v962
        %v977 = vpack.c.b16 %v965, %v964
        %v978 = vpack.c.b16 %v967, %v966
        %v979 = vpack.c.b16 %v969, %v968
        %v980 = vpack.c.b16 %v971, %v970
        %v981 = vpack.c.b16 %v973, %v972
        %990 = vmatpush.bf16.msra.mxu0 %v981
        %991 = vmatpush.bf16.msra.mxu0 %v980
        %992 = vmatpush.bf16.msra.mxu0 %v979
        %993 = vmatpush.bf16.msra.mxu0 %v978
        %994 = vmatpush.bf16.msra.mxu0 %v977
        %995 = vmatpush.bf16.msra.mxu0 %v976
        %996 = vmatpush.bf16.msra.mxu0 %v975
        %997 = vmatpush.bf16.msra.mxu0 %v974
        %998 = vmatmul.bf16.gmra.mxu0 %v940
        %v999 = vpop.f32.mrf.mxu0
        %v1000 = vadd.f32 %v934, %v999
        %v1001 = vpop.f32.mrf.mxu0
        %v1002 = vadd.f32 %v934, %v1001
        %1003 = vdwg.mxu0
        %v1004 = vtanh.pop %v1000
        %v1005 = vtanh.pop %v1002
        %v1006 = vpack.c.bf16 %v1005, %v1004
        %v1007 = vld [vmem:[%s4] sm:$0xf]
        %v1008 = vld [vmem:[%s4 + $0x4] sm:$0xf]
        %v1009 = vld [vmem:[%s4 + $0x8] sm:$0xf]
        %v1010 = vld [vmem:[%s4 + $0xc] sm:$0xf]
        %v1011 = vld [vmem:[%s4 + $0x10] sm:$0xf]
        %v1012 = vld [vmem:[%s4 + $0x14] sm:$0xf]
        %v1013 = vld [vmem:[%s4 + $0x18] sm:$0xf]
        %v1014 = vld [vmem:[%s4 + $0x1c] sm:$0xf]
        %v1015 = vld [vmem:[%s4 + $0x20] sm:$0xf]
        %v1016 = vld [vmem:[%s4 + $0x24] sm:$0xf]
        %v1017 = vld [vmem:[%s4 + $0x28] sm:$0xf]
        %v1018 = vld [vmem:[%s4 + $0x2c] sm:$0xf]
        %v1019 = vld [vmem:[%s4 + $0x30] sm:$0xf]
        %v1020 = vld [vmem:[%s4 + $0x34] sm:$0xf]
        %v1021 = vld [vmem:[%s4 + $0x38] sm:$0xf]
        %v1022 = vld [vmem:[%s4 + $0x3c] sm:$0xf]
        %v1023 = vld [vmem:[%s5] sm:$0x1]
        %v1025 = vperm.slane %v1023, 0
        %v1043 = vunpack.c.l.b16 %v1007
        %v1044 = vunpack.c.l.b16 %v1008
        %v1045 = vunpack.c.l.b16 %v1009
        %v1046 = vunpack.c.l.b16 %v1010
        %v1047 = vunpack.c.l.b16 %v1011
        %v1048 = vunpack.c.l.b16 %v1012
        %v1049 = vunpack.c.l.b16 %v1013
        %v1050 = vunpack.c.l.b16 %v1014
        %v1051 = vunpack.c.l.b16 %v1015
        %v1052 = vunpack.c.l.b16 %v1016
        %v1053 = vunpack.c.l.b16 %v1017
        %v1054 = vunpack.c.l.b16 %v1018
        %v1055 = vunpack.c.l.b16 %v1019
        %v1056 = vunpack.c.l.b16 %v1020
        %v1057 = vunpack.c.l.b16 %v1021
        %v1058 = vunpack.c.l.b16 %v1022
        %v1059 = vpack.c.b16 %v1044, %v1043
        %v1060 = vpack.c.b16 %v1046, %v1045
        %v1061 = vpack.c.b16 %v1048, %v1047
        %v1062 = vpack.c.b16 %v1050, %v1049
        %v1063 = vpack.c.b16 %v1052, %v1051
        %v1064 = vpack.c.b16 %v1054, %v1053
        %v1065 = vpack.c.b16 %v1056, %v1055
        %v1066 = vpack.c.b16 %v1058, %v1057
        %1075 = vmatpush.bf16.msra.mxu0 %v1066
        %1076 = vmatpush.bf16.msra.mxu0 %v1065
        %1077 = vmatpush.bf16.msra.mxu0 %v1064
        %1078 = vmatpush.bf16.msra.mxu0 %v1063
        %1079 = vmatpush.bf16.msra.mxu0 %v1062
        %1080 = vmatpush.bf16.msra.mxu0 %v1061
        %1081 = vmatpush.bf16.msra.mxu0 %v1060
        %1082 = vmatpush.bf16.msra.mxu0 %v1059
        %1083 = vmatmul.bf16.gmra.mxu0 %v1006
        %v1084 = vpop.f32.mrf.mxu0
        %v1085 = vadd.f32 %v1025, %v1084
        %v1086 = vpop.f32.mrf.mxu0
        %v1087 = vadd.f32 %v1025, %v1086
        %1088 = vdwg.mxu0
        %v1089 = vtanh.pop %v1085
        %v1090 = vtanh.pop %v1087
        %v1091 = vpack.c.bf16 %v1090, %v1089
        %v1092 = vld [vmem:[%s8] sm:$0xf]
        %v1093 = vld [vmem:[%s8 + $0x4] sm:$0xf]
        %v1094 = vld [vmem:[%s8 + $0x8] sm:$0xf]
        %v1095 = vld [vmem:[%s8 + $0xc] sm:$0xf]
        %v1096 = vld [vmem:[%s8 + $0x10] sm:$0xf]
        %v1097 = vld [vmem:[%s8 + $0x14] sm:$0xf]
        %v1098 = vld [vmem:[%s8 + $0x18] sm:$0xf]
        %v1099 = vld [vmem:[%s8 + $0x1c] sm:$0xf]
        %v1100 = vld [vmem:[%s8 + $0x20] sm:$0xf]
        %v1101 = vld [vmem:[%s8 + $0x24] sm:$0xf]
        %v1102 = vld [vmem:[%s8 + $0x28] sm:$0xf]
        %v1103 = vld [vmem:[%s8 + $0x2c] sm:$0xf]
        %v1104 = vld [vmem:[%s8 + $0x30] sm:$0xf]
        %v1105 = vld [vmem:[%s8 + $0x34] sm:$0xf]
        %v1106 = vld [vmem:[%s8 + $0x38] sm:$0xf]
        %v1107 = vld [vmem:[%s8 + $0x3c] sm:$0xf]
        %v1108 = vld [vmem:[%s9] sm:$0x1]
        %v1110 = vperm.slane %v1108, 0
        %v1128 = vunpack.c.l.b16 %v1092
        %v1129 = vunpack.c.l.b16 %v1093
        %v1130 = vunpack.c.l.b16 %v1094
        %v1131 = vunpack.c.l.b16 %v1095
        %v1132 = vunpack.c.l.b16 %v1096
        %v1133 = vunpack.c.l.b16 %v1097
        %v1134 = vunpack.c.l.b16 %v1098
        %v1135 = vunpack.c.l.b16 %v1099
        %v1136 = vunpack.c.l.b16 %v1100
        %v1137 = vunpack.c.l.b16 %v1101
        %v1138 = vunpack.c.l.b16 %v1102
        %v1139 = vunpack.c.l.b16 %v1103
        %v1140 = vunpack.c.l.b16 %v1104
        %v1141 = vunpack.c.l.b16 %v1105
        %v1142 = vunpack.c.l.b16 %v1106
        %v1143 = vunpack.c.l.b16 %v1107
        %v1144 = vpack.c.b16 %v1129, %v1128
        %v1145 = vpack.c.b16 %v1131, %v1130
        %v1146 = vpack.c.b16 %v1133, %v1132
        %v1147 = vpack.c.b16 %v1135, %v1134
        %v1148 = vpack.c.b16 %v1137, %v1136
        %v1149 = vpack.c.b16 %v1139, %v1138
        %v1150 = vpack.c.b16 %v1141, %v1140
        %v1151 = vpack.c.b16 %v1143, %v1142
        %1160 = vmatpush.bf16.msra.mxu0 %v1151
        %1161 = vmatpush.bf16.msra.mxu0 %v1150
        %1162 = vmatpush.bf16.msra.mxu0 %v1149
        %1163 = vmatpush.bf16.msra.mxu0 %v1148
        %1164 = vmatpush.bf16.msra.mxu0 %v1147
        %1165 = vmatpush.bf16.msra.mxu0 %v1146
        %1166 = vmatpush.bf16.msra.mxu0 %v1145
        %1167 = vmatpush.bf16.msra.mxu0 %v1144
        %1168 = vmatmul.bf16.gmra.mxu0 %v1091
        %v1169 = vpop.f32.mrf.mxu0
        %v1170 = vadd.f32 %v1110, %v1169
        %v1171 = vpop.f32.mrf.mxu0
        %v1172 = vadd.f32 %v1110, %v1171
        %1173 = vdwg.mxu0
        %v1174 = vlaneseq
        %v1175 = vand.u32 %v1174, 127
        %vm1176 = vcmp.lt.s32.totalorder %v1175, 11
        %v1177 = vxor.u32 %v1170, 2147483648
        %v1178 = vxor.u32 %v1172, 2147483648
        %v1179 = vmul.f32 %v1177, 1.442695
        %v1180 = vpow.pop %v1179
        %v1181 = vmul.f32 %v1178, 1.442695
        %v1182 = vpow.pop %v1181
        %v1183 = vadd.f32 %v1180, 1.0
        %v1184 = vadd.f32 %v1182, 1.0
        %v1185 = vrcp.pop %v1183
        %v1186 = vmul.f32 %v1183, %v1185
        %v1187 = vsub.f32 1.0, %v1186
        %v1188 = vmul.f32 %v1185, %v1187
        %v1189 = vadd.f32 %v1185, %v1188
        %vm1190 = vweird.f32 %v1183
        %vm1191 = vweird.f32 %v1185
        %vm1192 = vmor %vm1190, %vm1191
        %v1193 = vsel %vm1192, %v1185, %v1189
        %v1194 = vand.u32 2147483647, %v1183
        %vm1195 = vcmp.eq.f32.partialorder %v1194, 8.507059e+37
        %v1196 = vand.u32 %v1183, 2147483648
        %v1197 = vor.u32 1.1754944e-38, %v1196
        %v1198 = vsel %vm1195, %v1197, %v1193
        %v1199 = vmul.f32 1.0, %v1198
        %v1200 = vrcp.pop %v1184
        %v1201 = vmul.f32 %v1184, %v1200
        %v1202 = vsub.f32 1.0, %v1201
        %v1203 = vmul.f32 %v1200, %v1202
        %v1204 = vadd.f32 %v1200, %v1203
        %vm1205 = vweird.f32 %v1184
        %vm1206 = vweird.f32 %v1200
        %vm1207 = vmor %vm1205, %vm1206
        %v1208 = vsel %vm1207, %v1200, %v1204
        %v1209 = vand.u32 2147483647, %v1184
        %vm1210 = vcmp.eq.f32.partialorder %v1209, 8.507059e+37
        %v1211 = vand.u32 %v1184, 2147483648
        %v1212 = vor.u32 1.1754944e-38, %v1211
        %v1213 = vsel %vm1210, %v1212, %v1208
        %v1214 = vmul.f32 1.0, %v1213
        %v1215 = vsel %vm1176, %v1199, %v1170
        %v1216 = vsel %vm1176, %v1214, %v1172
        %1217 = vst [vmem:[%s11] sm:$0xff] %v1215
        %1218 = vst [vmem:[%s11 + $0x8] sm:$0xff] %v1216
      $region64: #{pretrain_bert_forward.1} parent=59 // pred_fallthru
        _
      %s1219 = smul.u32 32, %s23
      %p1220 = scmp.lt.s32.totalorder %s1219, 63
      %s1221 = scalar_select %p1220, %s1219, 63
      %s1222 = smul.addr %s1221, 8
      %s1223 = scalar_lea.vmem %s10, %s1222
      // Predicated region
      $region65: #{pretrain_bert_forward.1} parent=59 // pred_check
        %p1224 = pneg %p256
      $region66: #{pretrain_bert_forward.1} parent=59 // pred_check_branch
        %1226 = sbr.rel (%p1224) target = $region68
      $region67: #{pretrain_bert_forward.1} parent=59 // pred_region
        %s1227 = smul.u32 32, %s23
      $region68: #{pretrain_bert_forward.1} parent=59 // pred_fallthru
        _
      // Predicated region
      $region69: #{pretrain_bert_forward.1} parent=59 // pred_check
        %p1228 = pneg %p277
      $region70: #{pretrain_bert_forward.1} parent=59 // pred_check_branch
        %1230 = sbr.rel (%p1228) target = $region72
      $region71: #{pretrain_bert_forward.1} parent=59 // pred_region
        _
      $region72: #{pretrain_bert_forward.1} parent=59 // pred_fallthru
        _
      // Predicated region
      $region73: #{pretrain_bert_forward.1} parent=59 // pred_check
        %p1231 = pneg %p277
      $region74: #{pretrain_bert_forward.1} parent=59 // pred_check_branch
        %1233 = sbr.rel (%p1231) target = $region76
      $region75: #{pretrain_bert_forward.1} parent=59 // pred_region
        _
      $region76: #{pretrain_bert_forward.1} parent=59 // pred_fallthru
        _
    $region60: #{pretrain_bert_forward.1} parent=5 // pred_fallthru
      _
    %p1234 = scmp.le.s32.totalorder 2, %s18
    // Predicated region
    $region77: #{pretrain_bert_forward.1} parent=5 // pred_check
      %p1235 = pneg %p1234
    $region78: #{pretrain_bert_forward.1} parent=5 // pred_check_branch
      %1237 = sbr.rel (%p1235) target = $region80
    $region79: #{pretrain_bert_forward.1} parent=5 // pred_region
      %s1238 = ssub.s32 %s18, 2
      // Predicated region
      $region81: #{pretrain_bert_forward.1} parent=79 // pred_check
        %p1239 = pneg %p262
      $region82: #{pretrain_bert_forward.1} parent=79 // pred_check_branch
        %1241 = sbr.rel (%p1239) target = $region84
      $region83: #{pretrain_bert_forward.1} parent=79 // pred_region
        %s1242 = smul.u32 32, %s24
        %p1243 = scmp.lt.s32.totalorder %s1242, 63
        %s1244 = scalar_select %p1243, %s1242, 63
        %s1245 = smul.addr %s1244, 8
        %s1246 = scalar_lea.vmem %s10, %s1245
      $region84: #{pretrain_bert_forward.1} parent=79 // pred_fallthru
        _
    $region80: #{pretrain_bert_forward.1} parent=5 // pred_fallthru
      _
  $region6: #{pretrain_bert_forward.1} parent=0 // loop_footer
    %s22 = sadd.s32 1, %s18
  $region7: #{pretrain_bert_forward.1} parent=0 // loop_footer_branch
    %17 = sbr.rel target = $region3
  $region8: #{pretrain_bert_forward.1} parent=0 // loop_exit
    _

</llo_original>
